<compile_context>
chip_gen: v5e
topology: v5e:2x2
jax: 0.10.0
libtpu: 0.0.40
codegen_flags: <defaults>
</compile_context>

<pallas_src>
import jax
import jax.numpy as jnp
from jax.experimental import pallas as pl
from jax.experimental.pallas import tpu as pltpu

TILE_B = 512  # batch columns per grid step (multiple of 128 -> lane-dense vregs & stores)


def mlp_kernel(x_ref,
               w1_ref, b1_ref,
               w2_ref, b2_ref,
               w3_ref, b3_ref,
               w4_ref, b4_ref,
               w0_ref, b0_ref,
               o_ref):
    # x tile: (7, TILE_B).  Each layer: W (out, in) @ h (in, TILE_B) -> (out, TILE_B).
    h = jnp.dot(w1_ref[...], x_ref[...], preferred_element_type=jnp.float32) + b1_ref[...]
    h = jnp.maximum(h, 0.0)
    h = jnp.dot(w2_ref[...], h, preferred_element_type=jnp.float32) + b2_ref[...]
    h = jnp.maximum(h, 0.0)
    h = jnp.dot(w3_ref[...], h, preferred_element_type=jnp.float32) + b3_ref[...]
    h = jnp.maximum(h, 0.0)
    h = jnp.dot(w4_ref[...], h, preferred_element_type=jnp.float32) + b4_ref[...]
    h = jnp.maximum(h, 0.0)
    h = jnp.dot(w0_ref[...], h, preferred_element_type=jnp.float32) + b0_ref[...]
    o_ref[...] = h.astype(o_ref.dtype)


def mlp_forward(x, params, *, tile_b=TILE_B):
    """x: (B, 7) float32 (PyTorch layout).  Returns (B, 1) float32."""
    B = x.shape[0]

    # Transpose to batch-on-lanes and pad the batch axis up to a multiple of the tile.
    xt = x.T  # (7, B)
    pad_b = (-B) % tile_b
    if pad_b:
        xt = jnp.pad(xt, ((0, 0), (0, pad_b)))
    Bp = B + pad_b
    grid = (Bp // tile_b,)

    weights = (params["w1"], params["b1"],
               params["w2"], params["b2"],
               params["w3"], params["b3"],
               params["w4"], params["b4"],
               params["w0"], params["b0"])

    # x / out: tile only the batch (lane) axis; feature dims stay full-extent.
    x_spec = pl.BlockSpec((7, tile_b), lambda i: (0, i))
    out_spec = pl.BlockSpec((1, tile_b), lambda i: (0, i))
    # Weights / biases: full arrays with constant index maps -> VMEM-resident across the grid.
    w_specs = [pl.BlockSpec(w.shape, lambda i: (0, 0)) for w in weights]

    flops_per_row = 2 * (7 * 32 + 32 * 16 + 16 * 16 + 16 * 8 + 8 * 1)
    weight_bytes = sum(int(w.size) * w.dtype.itemsize for w in weights)
    cost = pl.CostEstimate(
        flops=flops_per_row * Bp,
        transcendentals=0,
        bytes_accessed=Bp * (7 + 1) * 4 + weight_bytes,
    )

    out_t = pl.pallas_call(
        mlp_kernel,
        out_shape=jax.ShapeDtypeStruct((1, Bp), jnp.float32),
        grid=grid,
        in_specs=[x_spec] + w_specs,
        out_specs=out_spec,
        compiler_params=pltpu.CompilerParams(
            dimension_semantics=("parallel",),   # shards batch tiles across TCs on v7x
        ),
        cost_estimate=cost,
    )(xt, *weights)

    return out_t[:, :B].T  # (B, 1)


def init_params(key):
    """Deterministic synthetic parameters matching the nn.Linear shapes of the module.

    Weights stored (out, in) like PyTorch; biases stored (out, 1) for the transposed layout.
    """
    sizes = [(7, 32), (32, 16), (16, 16), (16, 8), (8, 1)]
    names = ["1", "2", "3", "4", "0"]
    params = {}
    for (fan_in, fan_out), name in zip(sizes, names):
        key, kw, kb = jax.random.split(key, 3)
        bound = 1.0 / jnp.sqrt(fan_in)
        params[f"w{name}"] = jax.random.uniform(
            kw, (fan_out, fan_in), jnp.float32, -bound, bound)
        params[f"b{name}"] = jax.random.uniform(
            kb, (fan_out, 1), jnp.float32, -bound, bound)
    return params


def mlp_reference(x, params):
    """Pure-JAX reference (standard (B, features) layout) for correctness checking."""
    h = jnp.maximum(x @ params["w1"].T + params["b1"].T, 0.0)
    h = jnp.maximum(h @ params["w2"].T + params["b2"].T, 0.0)
    h = jnp.maximum(h @ params["w3"].T + params["b3"].T, 0.0)
    h = jnp.maximum(h @ params["w4"].T + params["b4"].T, 0.0)
    return h @ params["w0"].T + params["b0"].T


if __name__ == "__main__":
    key = jax.random.PRNGKey(0)
    kx, kp = jax.random.split(key)

    B = 8  # small batch; input feature dim fixed at 7 by the module's fc1
    x = jax.random.normal(kx, (B, 7), jnp.float32)
    params = init_params(kp)

    out = mlp_forward(x, params)
    out = jax.block_until_ready(out)

    ref = mlp_reference(x, params)
    assert out.shape == (B, 1), out.shape
    assert jnp.allclose(out, ref, atol=1e-5, rtol=1e-5), "mismatch vs reference"

    print("KERNEL_OK")
</pallas_src>

<mosaic_0001>
module attributes {stable_mosaic.version = 11 : i64} {
  func.func @mlp_kernel(%arg0: i32, %arg1: memref<7x512xf32, #tpu.memory_space<vmem>>, %arg2: memref<32x7xf32, #tpu.memory_space<vmem>>, %arg3: memref<32x1xf32, #tpu.memory_space<vmem>>, %arg4: memref<16x32xf32, #tpu.memory_space<vmem>>, %arg5: memref<16x1xf32, #tpu.memory_space<vmem>>, %arg6: memref<16x16xf32, #tpu.memory_space<vmem>>, %arg7: memref<16x1xf32, #tpu.memory_space<vmem>>, %arg8: memref<8x16xf32, #tpu.memory_space<vmem>>, %arg9: memref<8x1xf32, #tpu.memory_space<vmem>>, %arg10: memref<1x8xf32, #tpu.memory_space<vmem>>, %arg11: memref<1x1xf32, #tpu.memory_space<vmem>>, %arg12: memref<1x512xf32, #tpu.memory_space<vmem>>) attributes {dimension_semantics = [#tpu.dimension_semantics<parallel>], iteration_bounds = array<i64: 1>, scalar_prefetch = 0 : i64, scratch_operands = 0 : i64, tpu.core_type = #tpu.core_type<tc>, window_params = [{transform_indices = @transform_0, window_bounds = array<i64: 7, 512>}, {pipeline_mode = #tpu.pipeline_mode<synchronous>, transform_indices = @transform_1, window_bounds = array<i64: 32, 7>}, {pipeline_mode = #tpu.pipeline_mode<synchronous>, transform_indices = @transform_2, window_bounds = array<i64: 32, 1>}, {pipeline_mode = #tpu.pipeline_mode<synchronous>, transform_indices = @transform_3, window_bounds = array<i64: 16, 32>}, {pipeline_mode = #tpu.pipeline_mode<synchronous>, transform_indices = @transform_4, window_bounds = array<i64: 16, 1>}, {pipeline_mode = #tpu.pipeline_mode<synchronous>, transform_indices = @transform_5, window_bounds = array<i64: 16, 16>}, {pipeline_mode = #tpu.pipeline_mode<synchronous>, transform_indices = @transform_6, window_bounds = array<i64: 16, 1>}, {pipeline_mode = #tpu.pipeline_mode<synchronous>, transform_indices = @transform_7, window_bounds = array<i64: 8, 16>}, {pipeline_mode = #tpu.pipeline_mode<synchronous>, transform_indices = @transform_8, window_bounds = array<i64: 8, 1>}, {pipeline_mode = #tpu.pipeline_mode<synchronous>, transform_indices = @transform_9, window_bounds = array<i64: 1, 8>}, {pipeline_mode = #tpu.pipeline_mode<synchronous>, transform_indices = @transform_10, window_bounds = array<i64: 1, 1>}, {transform_indices = @transform_11, window_bounds = array<i64: 1, 512>}]} {
    %c0 = arith.constant 0 : index
    %c0_0 = arith.constant 0 : index
    %0 = vector.load %arg2[%c0, %c0_0] : memref<32x7xf32, #tpu.memory_space<vmem>>, vector<32x7xf32>
    %c0_1 = arith.constant 0 : index
    %c0_2 = arith.constant 0 : index
    %1 = vector.load %arg1[%c0_1, %c0_2] : memref<7x512xf32, #tpu.memory_space<vmem>>, vector<7x512xf32>
    %cst = arith.constant dense<0.000000e+00> : vector<32x512xf32>
    %2 = tpu.matmul %0, %1, %cst {dimension_numbers = #tpu.dot_dimension_numbers<[1], [0], [0], [1], [0, 0, 1, 1], [], []>} : vector<32x7xf32>, vector<7x512xf32>, vector<32x512xf32> -> vector<32x512xf32>
    %c0_3 = arith.constant 0 : index
    %c0_4 = arith.constant 0 : index
    %3 = vector.load %arg3[%c0_3, %c0_4] : memref<32x1xf32, #tpu.memory_space<vmem>>, vector<32x1xf32>
    %4 = vector.broadcast %3 : vector<32x1xf32> to vector<32x512xf32>
    %5 = arith.addf %2, %4 : vector<32x512xf32>
    %cst_5 = arith.constant 0.000000e+00 : f32
    %6 = vector.broadcast %cst_5 : f32 to vector<32x512xf32>
    %7 = arith.maximumf %5, %6 : vector<32x512xf32>
    %c0_6 = arith.constant 0 : index
    %c0_7 = arith.constant 0 : index
    %8 = vector.load %arg4[%c0_6, %c0_7] : memref<16x32xf32, #tpu.memory_space<vmem>>, vector<16x32xf32>
    %cst_8 = arith.constant dense<0.000000e+00> : vector<16x512xf32>
    %9 = tpu.matmul %8, %7, %cst_8 {dimension_numbers = #tpu.dot_dimension_numbers<[1], [0], [0], [1], [0, 0, 1, 1], [], []>} : vector<16x32xf32>, vector<32x512xf32>, vector<16x512xf32> -> vector<16x512xf32>
    %c0_9 = arith.constant 0 : index
    %c0_10 = arith.constant 0 : index
    %10 = vector.load %arg5[%c0_9, %c0_10] : memref<16x1xf32, #tpu.memory_space<vmem>>, vector<16x1xf32>
    %11 = vector.broadcast %10 : vector<16x1xf32> to vector<16x512xf32>
    %12 = arith.addf %9, %11 : vector<16x512xf32>
    %cst_11 = arith.constant 0.000000e+00 : f32
    %13 = vector.broadcast %cst_11 : f32 to vector<16x512xf32>
    %14 = arith.maximumf %12, %13 : vector<16x512xf32>
    %c0_12 = arith.constant 0 : index
    %c0_13 = arith.constant 0 : index
    %15 = vector.load %arg6[%c0_12, %c0_13] : memref<16x16xf32, #tpu.memory_space<vmem>>, vector<16x16xf32>
    %cst_14 = arith.constant dense<0.000000e+00> : vector<16x512xf32>
    %16 = tpu.matmul %15, %14, %cst_14 {dimension_numbers = #tpu.dot_dimension_numbers<[1], [0], [0], [1], [0, 0, 1, 1], [], []>} : vector<16x16xf32>, vector<16x512xf32>, vector<16x512xf32> -> vector<16x512xf32>
    %c0_15 = arith.constant 0 : index
    %c0_16 = arith.constant 0 : index
    %17 = vector.load %arg7[%c0_15, %c0_16] : memref<16x1xf32, #tpu.memory_space<vmem>>, vector<16x1xf32>
    %18 = vector.broadcast %17 : vector<16x1xf32> to vector<16x512xf32>
    %19 = arith.addf %16, %18 : vector<16x512xf32>
    %cst_17 = arith.constant 0.000000e+00 : f32
    %20 = vector.broadcast %cst_17 : f32 to vector<16x512xf32>
    %21 = arith.maximumf %19, %20 : vector<16x512xf32>
    %c0_18 = arith.constant 0 : index
    %c0_19 = arith.constant 0 : index
    %22 = vector.load %arg8[%c0_18, %c0_19] : memref<8x16xf32, #tpu.memory_space<vmem>>, vector<8x16xf32>
    %cst_20 = arith.constant dense<0.000000e+00> : vector<8x512xf32>
    %23 = tpu.matmul %22, %21, %cst_20 {dimension_numbers = #tpu.dot_dimension_numbers<[1], [0], [0], [1], [0, 0, 1, 1], [], []>} : vector<8x16xf32>, vector<16x512xf32>, vector<8x512xf32> -> vector<8x512xf32>
    %c0_21 = arith.constant 0 : index
    %c0_22 = arith.constant 0 : index
    %24 = vector.load %arg9[%c0_21, %c0_22] : memref<8x1xf32, #tpu.memory_space<vmem>>, vector<8x1xf32>
    %25 = vector.broadcast %24 : vector<8x1xf32> to vector<8x512xf32>
    %26 = arith.addf %23, %25 : vector<8x512xf32>
    %cst_23 = arith.constant 0.000000e+00 : f32
    %27 = vector.broadcast %cst_23 : f32 to vector<8x512xf32>
    %28 = arith.maximumf %26, %27 : vector<8x512xf32>
    %c0_24 = arith.constant 0 : index
    %c0_25 = arith.constant 0 : index
    %29 = vector.load %arg10[%c0_24, %c0_25] : memref<1x8xf32, #tpu.memory_space<vmem>>, vector<1x8xf32>
    %cst_26 = arith.constant dense<0.000000e+00> : vector<1x512xf32>
    %30 = tpu.matmul %29, %28, %cst_26 {dimension_numbers = #tpu.dot_dimension_numbers<[1], [0], [0], [1], [0, 0, 1, 1], [], []>} : vector<1x8xf32>, vector<8x512xf32>, vector<1x512xf32> -> vector<1x512xf32>
    %c0_27 = arith.constant 0 : index
    %c0_28 = arith.constant 0 : index
    %31 = vector.load %arg11[%c0_27, %c0_28] : memref<1x1xf32, #tpu.memory_space<vmem>>, vector<1x1xf32>
    %32 = vector.broadcast %31 : vector<1x1xf32> to vector<1x512xf32>
    %33 = arith.addf %30, %32 : vector<1x512xf32>
    %c0_29 = arith.constant 0 : index
    %c0_30 = arith.constant 0 : index
    %34 = vector.load %arg12[%c0_29, %c0_30] : memref<1x512xf32, #tpu.memory_space<vmem>>, vector<1x512xf32>
    tpu.vector_store %arg12[%c0_29, %c0_30], %33 {strides = array<i32>} : memref<1x512xf32, #tpu.memory_space<vmem>>, vector<1x512xf32>,
    return
  }
  func.func @transform_0(%arg0: i32) -> (i32, i32) {
    %c0_i32 = arith.constant 0 : i32
    %c0_i32_0 = arith.constant 0 : i32
    return %c0_i32, %arg0 : i32, i32
  }
  func.func @transform_1(%arg0: i32) -> (i32, i32) {
    %c0_i32 = arith.constant 0 : i32
    %c0_i32_0 = arith.constant 0 : i32
    %c0_i32_1 = arith.constant 0 : i32
    return %c0_i32, %c0_i32_0 : i32, i32
  }
  func.func @transform_2(%arg0: i32) -> (i32, i32) {
    %c0_i32 = arith.constant 0 : i32
    %c0_i32_0 = arith.constant 0 : i32
    %c0_i32_1 = arith.constant 0 : i32
    return %c0_i32, %c0_i32_0 : i32, i32
  }
  func.func @transform_3(%arg0: i32) -> (i32, i32) {
    %c0_i32 = arith.constant 0 : i32
    %c0_i32_0 = arith.constant 0 : i32
    %c0_i32_1 = arith.constant 0 : i32
    return %c0_i32, %c0_i32_0 : i32, i32
  }
  func.func @transform_4(%arg0: i32) -> (i32, i32) {
    %c0_i32 = arith.constant 0 : i32
    %c0_i32_0 = arith.constant 0 : i32
    %c0_i32_1 = arith.constant 0 : i32
    return %c0_i32, %c0_i32_0 : i32, i32
  }
  func.func @transform_5(%arg0: i32) -> (i32, i32) {
    %c0_i32 = arith.constant 0 : i32
    %c0_i32_0 = arith.constant 0 : i32
    %c0_i32_1 = arith.constant 0 : i32
    return %c0_i32, %c0_i32_0 : i32, i32
  }
  func.func @transform_6(%arg0: i32) -> (i32, i32) {
    %c0_i32 = arith.constant 0 : i32
    %c0_i32_0 = arith.constant 0 : i32
    %c0_i32_1 = arith.constant 0 : i32
    return %c0_i32, %c0_i32_0 : i32, i32
  }
  func.func @transform_7(%arg0: i32) -> (i32, i32) {
    %c0_i32 = arith.constant 0 : i32
    %c0_i32_0 = arith.constant 0 : i32
    %c0_i32_1 = arith.constant 0 : i32
    return %c0_i32, %c0_i32_0 : i32, i32
  }
  func.func @transform_8(%arg0: i32) -> (i32, i32) {
    %c0_i32 = arith.constant 0 : i32
    %c0_i32_0 = arith.constant 0 : i32
    %c0_i32_1 = arith.constant 0 : i32
    return %c0_i32, %c0_i32_0 : i32, i32
  }
  func.func @transform_9(%arg0: i32) -> (i32, i32) {
    %c0_i32 = arith.constant 0 : i32
    %c0_i32_0 = arith.constant 0 : i32
    %c0_i32_1 = arith.constant 0 : i32
    return %c0_i32, %c0_i32_0 : i32, i32
  }
  func.func @transform_10(%arg0: i32) -> (i32, i32) {
    %c0_i32 = arith.constant 0 : i32
    %c0_i32_0 = arith.constant 0 : i32
    %c0_i32_1 = arith.constant 0 : i32
    return %c0_i32, %c0_i32_0 : i32, i32
  }
  func.func @transform_11(%arg0: i32) -> (i32, i32) {
    %c0_i32 = arith.constant 0 : i32
    %c0_i32_0 = arith.constant 0 : i32
    return %c0_i32, %arg0 : i32, i32
  }
}

</mosaic_0001>

<llo_original>
// kernel: tpu_custom_call.1
$region0: #{tpu_custom_call.1}
  #allocation0 [shape = 'u32[]', space=smem, size = 0x4, offset = 0x4, fixed_abs, tag = 'smem constant byte address 0x4 - core index']
  #allocation1 [shape = 'u32[72,128]{1,0:T(1,128)}', space=vmem, size = 0x9000, scoped, tag = 'internal scratch']
  #allocation2 [shape = 'f32[1,1]{1,0:T(1,128)S(1)}', space=vmem, size = 0x200, scoped, tag = 'scoped memory for tpu_custom_call.1']
  %s0 = inlined_call_operand.vmem [shape: f32[7,512], index: 0, kind: input, shape index: {}]
  %s1 = inlined_call_operand.vmem [shape: f32[32,7], index: 1, kind: input, shape index: {}]
  %s2 = inlined_call_operand.vmem [shape: f32[32,1], index: 2, kind: input, shape index: {}]
  %s3 = inlined_call_operand.vmem [shape: f32[16,32], index: 3, kind: input, shape index: {}]
  %s4 = inlined_call_operand.vmem [shape: f32[16,1], index: 4, kind: input, shape index: {}]
  %s5 = inlined_call_operand.vmem [shape: f32[16,16], index: 5, kind: input, shape index: {}]
  %s6 = inlined_call_operand.vmem [shape: f32[16,1], index: 6, kind: input, shape index: {}]
  %s7 = inlined_call_operand.vmem [shape: f32[8,16], index: 7, kind: input, shape index: {}]
  %s8 = inlined_call_operand.vmem [shape: f32[8,1], index: 8, kind: input, shape index: {}]
  %s9 = inlined_call_operand.vmem [shape: f32[1,8], index: 9, kind: input, shape index: {}]
  %s10 = inlined_call_operand.<no memory space> [shape: f32[1,1], index: 10, kind: input, shape index: {}]
  %s11 = inlined_call_operand.hbm [shape: f32[1,512], index: 11, kind: output, shape index: {}]
  %s12 = sld [smem:[#allocation0]]
  $region54: #{tpu_custom_call.1} parent=0
    _
  %s14 = ssub.s32 1, %s12
  %s15 = scalar_select 0, %s14, %s12
  %v16 = vstv %s10
  %17 = vst [vmem:[#allocation2] sm:$0x1] %v16
  $region1: #{tpu_custom_call.1} parent=0
    #allocation3 [shape = 'u8[2048]{0}', space=vmem, size = 0x800, scoped, tag = 'output window, operand 0, single buffered']
    #allocation4 [shape = 's32[1]{0}', space=sflag, size = 0x4, scoped, tag = 'scoped memory for tpu_custom_call.1']
    %18 = vsyncpa [#allocation4], 0
    // Predicated region
    $region2: #{tpu_custom_call.1} parent=1 // pred_check
      _
    $region3: #{tpu_custom_call.1} parent=1 // pred_check_branch
      %20 = sbr.rel (0) target = $region5
    $region4: #{tpu_custom_call.1} parent=1 // pred_region
      _
    $region5: #{tpu_custom_call.1} parent=1 // pred_fallthru
      _
    // Predicated region
    $region6: #{tpu_custom_call.1} parent=1 // pred_check
      _
    $region7: #{tpu_custom_call.1} parent=1 // pred_check_branch
      %22 = sbr.rel (0) target = $region9
    $region8: #{tpu_custom_call.1} parent=1 // pred_region
      _
    $region9: #{tpu_custom_call.1} parent=1 // pred_fallthru
      _
    // Predicated region
    $region10: #{tpu_custom_call.1} parent=1 // pred_check
      _
    $region11: #{tpu_custom_call.1} parent=1 // pred_check_branch
      %24 = sbr.rel (0) target = $region13
    $region12: #{tpu_custom_call.1} parent=1 // pred_region
      _
    $region13: #{tpu_custom_call.1} parent=1 // pred_fallthru
      _
    // Predicated region
    $region14: #{tpu_custom_call.1} parent=1 // pred_check
      _
    $region15: #{tpu_custom_call.1} parent=1 // pred_check_branch
      %26 = sbr.rel (0) target = $region17
    $region16: #{tpu_custom_call.1} parent=1 // pred_region
      _
    $region17: #{tpu_custom_call.1} parent=1 // pred_fallthru
      _
    // Predicated region
    $region18: #{tpu_custom_call.1} parent=1 // pred_check
      _
    $region19: #{tpu_custom_call.1} parent=1 // pred_check_branch
      %28 = sbr.rel (0) target = $region21
    $region20: #{tpu_custom_call.1} parent=1 // pred_region
      _
    $region21: #{tpu_custom_call.1} parent=1 // pred_fallthru
      _
    // Predicated region
    $region22: #{tpu_custom_call.1} parent=1 // pred_check
      _
    $region23: #{tpu_custom_call.1} parent=1 // pred_check_branch
      %30 = sbr.rel (0) target = $region25
    $region24: #{tpu_custom_call.1} parent=1 // pred_region
      _
    $region25: #{tpu_custom_call.1} parent=1 // pred_fallthru
      _
    // Predicated region
    $region26: #{tpu_custom_call.1} parent=1 // pred_check
      _
    $region27: #{tpu_custom_call.1} parent=1 // pred_check_branch
      %32 = sbr.rel (0) target = $region29
    $region28: #{tpu_custom_call.1} parent=1 // pred_region
      _
    $region29: #{tpu_custom_call.1} parent=1 // pred_fallthru
      _
    // Predicated region
    $region30: #{tpu_custom_call.1} parent=1 // pred_check
      _
    $region31: #{tpu_custom_call.1} parent=1 // pred_check_branch
      %34 = sbr.rel (0) target = $region33
    $region32: #{tpu_custom_call.1} parent=1 // pred_region
      _
    $region33: #{tpu_custom_call.1} parent=1 // pred_fallthru
      _
    // Predicated region
    $region34: #{tpu_custom_call.1} parent=1 // pred_check
      _
    $region35: #{tpu_custom_call.1} parent=1 // pred_check_branch
      %36 = sbr.rel (0) target = $region37
    $region36: #{tpu_custom_call.1} parent=1 // pred_region
      _
    $region37: #{tpu_custom_call.1} parent=1 // pred_fallthru
      _
    // Predicated region
    $region38: #{tpu_custom_call.1} parent=1 // pred_check
      _
    $region39: #{tpu_custom_call.1} parent=1 // pred_check_branch
      %38 = sbr.rel (0) target = $region41
    $region40: #{tpu_custom_call.1} parent=1 // pred_region
      _
    $region41: #{tpu_custom_call.1} parent=1 // pred_fallthru
      _
    // Predicated region
    $region42: #{tpu_custom_call.1} parent=1 // pred_check
      _
    $region43: #{tpu_custom_call.1} parent=1 // pred_check_branch
      %40 = sbr.rel (0) target = $region45
    $region44: #{tpu_custom_call.1} parent=1 // pred_region
      _
    $region45: #{tpu_custom_call.1} parent=1 // pred_fallthru
      _
    %v41 = vld [vmem:[%s1] sm:$0xff]
    %v42 = vld [vmem:[%s1 + $0x8] sm:$0xff]
    %v43 = vld [vmem:[%s1 + $0x10] sm:$0xff]
    %v44 = vld [vmem:[%s1 + $0x18] sm:$0xff]
    %v45 = vld [vmem:[%s0] sm:$0x7f]
    %v46 = vld [vmem:[%s0 + $0x8] sm:$0x7f]
    %v47 = vld [vmem:[%s0 + $0x10] sm:$0x7f]
    %v48 = vld [vmem:[%s0 + $0x18] sm:$0x7f]
    %v49 = vld [vmem:[%s2] sm:$0xff]
    %v50 = vld [vmem:[%s2 + $0x8] sm:$0xff]
    %v51 = vld [vmem:[%s2 + $0x10] sm:$0xff]
    %v52 = vld [vmem:[%s2 + $0x18] sm:$0xff]
    %54 = vset.pattern.permute.xlu0 0
    %55 = vperm.xlu0 %54, %v49
    %v56 = vpop.permute.xlu0 %55
    %59 = vset.pattern.permute.xlu0 0
    %60 = vperm.xlu0 %59, %v50
    %v61 = vpop.permute.xlu0 %60
    %64 = vset.pattern.permute.xlu0 0
    %65 = vperm.xlu0 %64, %v51
    %v66 = vpop.permute.xlu0 %65
    %69 = vset.pattern.permute.xlu0 0
    %70 = vperm.xlu0 %69, %v52
    %v71 = vpop.permute.xlu0 %70
    %vm73 = vcmask 56320
    %v75 = vsel %vm73, %v41, 0
    %v78 = vsel %vm73, %v42, 0
    %v81 = vsel %vm73, %v43, 0
    %v84 = vsel %vm73, %v44, 0
    %vm86 = vcmask 1046528
    %v88 = vsel %vm86, %v45, 0
    %v91 = vsel %vm86, %v46, 0
    %v94 = vsel %vm86, %v47, 0
    %v97 = vsel %vm86, %v48, 0
    %99 = vmatpush.msra.mxu0 0.0
    %100 = vmatpush.msra.mxu0 0.0
    %101 = vmatpush.msra.mxu0 0.0
    %102 = vmatpush.msra.mxu0 0.0
    %103 = vmatpush.msra.mxu0 0.0
    %104 = vmatpush.msra.mxu0 0.0
    %105 = vmatpush.msra.mxu0 0.0
    %106 = vmatpush.msra.mxu0 0.0
    %107 = vmatpush.msra.mxu0 0.0
    %108 = vmatpush.msra.mxu0 0.0
    %109 = vmatpush.msra.mxu0 0.0
    %110 = vmatpush.msra.mxu0 0.0
    %111 = vmatpush.msra.mxu0 0.0
    %112 = vmatpush.msra.mxu0 0.0
    %113 = vmatpush.msra.mxu0 0.0
    %114 = vmatpush.msra.mxu0 %v88
    %115 = vmatmul.f32.gmra.mxu0 %v75
    %v116 = vpop.f32.mrf.mxu0
    %v117 = vadd.f32 %v56, %v116
    %118 = vmatmul.f32.gmra.mxu0 %v78
    %v119 = vpop.f32.mrf.mxu0
    %v120 = vadd.f32 %v61, %v119
    %121 = vmatmul.f32.gmra.mxu0 %v81
    %v122 = vpop.f32.mrf.mxu0
    %v123 = vadd.f32 %v66, %v122
    %124 = vmatmul.f32.gmra.mxu0 %v84
    %v125 = vpop.f32.mrf.mxu0
    %v126 = vadd.f32 %v71, %v125
    %127 = vdwg.mxu0
    %128 = vmatpush.msra.mxu0 0.0
    %129 = vmatpush.msra.mxu0 0.0
    %130 = vmatpush.msra.mxu0 0.0
    %131 = vmatpush.msra.mxu0 0.0
    %132 = vmatpush.msra.mxu0 0.0
    %133 = vmatpush.msra.mxu0 0.0
    %134 = vmatpush.msra.mxu0 0.0
    %135 = vmatpush.msra.mxu0 0.0
    %136 = vmatpush.msra.mxu0 0.0
    %137 = vmatpush.msra.mxu0 0.0
    %138 = vmatpush.msra.mxu0 0.0
    %139 = vmatpush.msra.mxu0 0.0
    %140 = vmatpush.msra.mxu0 0.0
    %141 = vmatpush.msra.mxu0 0.0
    %142 = vmatpush.msra.mxu0 0.0
    %143 = vmatpush.msra.mxu0 %v91
    %144 = vmatmul.f32.gmra.mxu0 %v75
    %v145 = vpop.f32.mrf.mxu0
    %v146 = vadd.f32 %v56, %v145
    %147 = vmatmul.f32.gmra.mxu0 %v78
    %v148 = vpop.f32.mrf.mxu0
    %v149 = vadd.f32 %v61, %v148
    %150 = vmatmul.f32.gmra.mxu0 %v81
    %v151 = vpop.f32.mrf.mxu0
    %v152 = vadd.f32 %v66, %v151
    %153 = vmatmul.f32.gmra.mxu0 %v84
    %v154 = vpop.f32.mrf.mxu0
    %v155 = vadd.f32 %v71, %v154
    %156 = vdwg.mxu0
    %157 = vmatpush.msra.mxu0 0.0
    %158 = vmatpush.msra.mxu0 0.0
    %159 = vmatpush.msra.mxu0 0.0
    %160 = vmatpush.msra.mxu0 0.0
    %161 = vmatpush.msra.mxu0 0.0
    %162 = vmatpush.msra.mxu0 0.0
    %163 = vmatpush.msra.mxu0 0.0
    %164 = vmatpush.msra.mxu0 0.0
    %165 = vmatpush.msra.mxu0 0.0
    %166 = vmatpush.msra.mxu0 0.0
    %167 = vmatpush.msra.mxu0 0.0
    %168 = vmatpush.msra.mxu0 0.0
    %169 = vmatpush.msra.mxu0 0.0
    %170 = vmatpush.msra.mxu0 0.0
    %171 = vmatpush.msra.mxu0 0.0
    %172 = vmatpush.msra.mxu0 %v94
    %173 = vmatmul.f32.gmra.mxu0 %v75
    %v174 = vpop.f32.mrf.mxu0
    %v175 = vadd.f32 %v56, %v174
    %176 = vmatmul.f32.gmra.mxu0 %v78
    %v177 = vpop.f32.mrf.mxu0
    %v178 = vadd.f32 %v61, %v177
    %179 = vmatmul.f32.gmra.mxu0 %v81
    %v180 = vpop.f32.mrf.mxu0
    %v181 = vadd.f32 %v66, %v180
    %182 = vmatmul.f32.gmra.mxu0 %v84
    %v183 = vpop.f32.mrf.mxu0
    %v184 = vadd.f32 %v71, %v183
    %185 = vdwg.mxu0
    %186 = vmatpush.msra.mxu0 0.0
    %187 = vmatpush.msra.mxu0 0.0
    %188 = vmatpush.msra.mxu0 0.0
    %189 = vmatpush.msra.mxu0 0.0
    %190 = vmatpush.msra.mxu0 0.0
    %191 = vmatpush.msra.mxu0 0.0
    %192 = vmatpush.msra.mxu0 0.0
    %193 = vmatpush.msra.mxu0 0.0
    %194 = vmatpush.msra.mxu0 0.0
    %195 = vmatpush.msra.mxu0 0.0
    %196 = vmatpush.msra.mxu0 0.0
    %197 = vmatpush.msra.mxu0 0.0
    %198 = vmatpush.msra.mxu0 0.0
    %199 = vmatpush.msra.mxu0 0.0
    %200 = vmatpush.msra.mxu0 0.0
    %201 = vmatpush.msra.mxu0 %v97
    %202 = vmatmul.f32.gmra.mxu0 %v75
    %v203 = vpop.f32.mrf.mxu0
    %v204 = vadd.f32 %v56, %v203
    %205 = vmatmul.f32.gmra.mxu0 %v78
    %v206 = vpop.f32.mrf.mxu0
    %v207 = vadd.f32 %v61, %v206
    %208 = vmatmul.f32.gmra.mxu0 %v81
    %v209 = vpop.f32.mrf.mxu0
    %v210 = vadd.f32 %v66, %v209
    %211 = vmatmul.f32.gmra.mxu0 %v84
    %v212 = vpop.f32.mrf.mxu0
    %v213 = vadd.f32 %v71, %v212
    %214 = vdwg.mxu0
    %v215 = vmax.f32 %v117, 0.0
    %v216 = vmax.f32 %v146, 0.0
    %v217 = vmax.f32 %v175, 0.0
    %v218 = vmax.f32 %v204, 0.0
    %v219 = vmax.f32 %v120, 0.0
    %v220 = vmax.f32 %v149, 0.0
    %v221 = vmax.f32 %v178, 0.0
    %v222 = vmax.f32 %v207, 0.0
    %v223 = vmax.f32 %v123, 0.0
    %v224 = vmax.f32 %v152, 0.0
    %v225 = vmax.f32 %v181, 0.0
    %v226 = vmax.f32 %v210, 0.0
    %v227 = vmax.f32 %v126, 0.0
    %v228 = vmax.f32 %v155, 0.0
    %v229 = vmax.f32 %v184, 0.0
    %v230 = vmax.f32 %v213, 0.0
    %v231 = vld [vmem:[%s3] sm:$0xff]
    %v232 = vld [vmem:[%s3 + $0x8] sm:$0xff]
    %v233 = vld [vmem:[%s4] sm:$0xff]
    %v234 = vld [vmem:[%s4 + $0x8] sm:$0xff]
    %236 = vset.pattern.permute.xlu0 0
    %237 = vperm.xlu0 %236, %v233
    %v238 = vpop.permute.xlu0 %237
    %241 = vset.pattern.permute.xlu0 0
    %242 = vperm.xlu0 %241, %v234
    %v243 = vpop.permute.xlu0 %242
    %vm245 = vcmask 261120
    %v247 = vsel %vm245, %v231, 0
    %v250 = vsel %vm245, %v232, 0
    %252 = vmatpush.msra.mxu0 0.0
    %253 = vmatpush.msra.mxu0 0.0
    %254 = vmatpush.msra.mxu0 0.0
    %255 = vmatpush.msra.mxu0 0.0
    %256 = vmatpush.msra.mxu0 0.0
    %257 = vmatpush.msra.mxu0 0.0
    %258 = vmatpush.msra.mxu0 0.0
    %259 = vmatpush.msra.mxu0 0.0
    %260 = vmatpush.msra.mxu0 0.0
    %261 = vmatpush.msra.mxu0 0.0
    %262 = vmatpush.msra.mxu0 0.0
    %263 = vmatpush.msra.mxu0 0.0
    %264 = vmatpush.msra.mxu0 %v227
    %265 = vmatpush.msra.mxu0 %v223
    %266 = vmatpush.msra.mxu0 %v219
    %267 = vmatpush.msra.mxu0 %v215
    %268 = vmatmul.f32.gmra.mxu0 %v247
    %v269 = vpop.f32.mrf.mxu0
    %v270 = vadd.f32 %v238, %v269
    %271 = vmatmul.f32.gmra.mxu0 %v250
    %v272 = vpop.f32.mrf.mxu0
    %v273 = vadd.f32 %v243, %v272
    %274 = vdwg.mxu0
    %275 = vmatpush.msra.mxu0 0.0
    %276 = vmatpush.msra.mxu0 0.0
    %277 = vmatpush.msra.mxu0 0.0
    %278 = vmatpush.msra.mxu0 0.0
    %279 = vmatpush.msra.mxu0 0.0
    %280 = vmatpush.msra.mxu0 0.0
    %281 = vmatpush.msra.mxu0 0.0
    %282 = vmatpush.msra.mxu0 0.0
    %283 = vmatpush.msra.mxu0 0.0
    %284 = vmatpush.msra.mxu0 0.0
    %285 = vmatpush.msra.mxu0 0.0
    %286 = vmatpush.msra.mxu0 0.0
    %287 = vmatpush.msra.mxu0 %v228
    %288 = vmatpush.msra.mxu0 %v224
    %289 = vmatpush.msra.mxu0 %v220
    %290 = vmatpush.msra.mxu0 %v216
    %291 = vmatmul.f32.gmra.mxu0 %v247
    %v292 = vpop.f32.mrf.mxu0
    %v293 = vadd.f32 %v238, %v292
    %294 = vmatmul.f32.gmra.mxu0 %v250
    %v295 = vpop.f32.mrf.mxu0
    %v296 = vadd.f32 %v243, %v295
    %297 = vdwg.mxu0
    %298 = vmatpush.msra.mxu0 0.0
    %299 = vmatpush.msra.mxu0 0.0
    %300 = vmatpush.msra.mxu0 0.0
    %301 = vmatpush.msra.mxu0 0.0
    %302 = vmatpush.msra.mxu0 0.0
    %303 = vmatpush.msra.mxu0 0.0
    %304 = vmatpush.msra.mxu0 0.0
    %305 = vmatpush.msra.mxu0 0.0
    %306 = vmatpush.msra.mxu0 0.0
    %307 = vmatpush.msra.mxu0 0.0
    %308 = vmatpush.msra.mxu0 0.0
    %309 = vmatpush.msra.mxu0 0.0
    %310 = vmatpush.msra.mxu0 %v229
    %311 = vmatpush.msra.mxu0 %v225
    %312 = vmatpush.msra.mxu0 %v221
    %313 = vmatpush.msra.mxu0 %v217
    %314 = vmatmul.f32.gmra.mxu0 %v247
    %v315 = vpop.f32.mrf.mxu0
    %v316 = vadd.f32 %v238, %v315
    %317 = vmatmul.f32.gmra.mxu0 %v250
    %v318 = vpop.f32.mrf.mxu0
    %v319 = vadd.f32 %v243, %v318
    %320 = vdwg.mxu0
    %321 = vmatpush.msra.mxu0 0.0
    %322 = vmatpush.msra.mxu0 0.0
    %323 = vmatpush.msra.mxu0 0.0
    %324 = vmatpush.msra.mxu0 0.0
    %325 = vmatpush.msra.mxu0 0.0
    %326 = vmatpush.msra.mxu0 0.0
    %327 = vmatpush.msra.mxu0 0.0
    %328 = vmatpush.msra.mxu0 0.0
    %329 = vmatpush.msra.mxu0 0.0
    %330 = vmatpush.msra.mxu0 0.0
    %331 = vmatpush.msra.mxu0 0.0
    %332 = vmatpush.msra.mxu0 0.0
    %333 = vmatpush.msra.mxu0 %v230
    %334 = vmatpush.msra.mxu0 %v226
    %335 = vmatpush.msra.mxu0 %v222
    %336 = vmatpush.msra.mxu0 %v218
    %337 = vmatmul.f32.gmra.mxu0 %v247
    %v338 = vpop.f32.mrf.mxu0
    %v339 = vadd.f32 %v238, %v338
    %340 = vmatmul.f32.gmra.mxu0 %v250
    %v341 = vpop.f32.mrf.mxu0
    %v342 = vadd.f32 %v243, %v341
    %343 = vdwg.mxu0
    %v344 = vmax.f32 %v270, 0.0
    %v345 = vmax.f32 %v293, 0.0
    %v346 = vmax.f32 %v316, 0.0
    %v347 = vmax.f32 %v339, 0.0
    %v348 = vmax.f32 %v273, 0.0
    %v349 = vmax.f32 %v296, 0.0
    %v350 = vmax.f32 %v319, 0.0
    %v351 = vmax.f32 %v342, 0.0
    %v352 = vld [vmem:[%s5] sm:$0xff]
    %v353 = vld [vmem:[%s5 + $0x8] sm:$0xff]
    %v354 = vld [vmem:[%s6] sm:$0xff]
    %v355 = vld [vmem:[%s6 + $0x8] sm:$0xff]
    %357 = vset.pattern.permute.xlu0 0
    %358 = vperm.xlu0 %357, %v354
    %v359 = vpop.permute.xlu0 %358
    %362 = vset.pattern.permute.xlu0 0
    %363 = vperm.xlu0 %362, %v355
    %v364 = vpop.permute.xlu0 %363
    %vm366 = vcmask 130048
    %v368 = vsel %vm366, %v352, 0
    %v371 = vsel %vm366, %v353, 0
    %373 = vmatpush.msra.mxu0 0.0
    %374 = vmatpush.msra.mxu0 0.0
    %375 = vmatpush.msra.mxu0 0.0
    %376 = vmatpush.msra.mxu0 0.0
    %377 = vmatpush.msra.mxu0 0.0
    %378 = vmatpush.msra.mxu0 0.0
    %379 = vmatpush.msra.mxu0 0.0
    %380 = vmatpush.msra.mxu0 0.0
    %381 = vmatpush.msra.mxu0 0.0
    %382 = vmatpush.msra.mxu0 0.0
    %383 = vmatpush.msra.mxu0 0.0
    %384 = vmatpush.msra.mxu0 0.0
    %385 = vmatpush.msra.mxu0 0.0
    %386 = vmatpush.msra.mxu0 0.0
    %387 = vmatpush.msra.mxu0 %v348
    %388 = vmatpush.msra.mxu0 %v344
    %389 = vmatmul.f32.gmra.mxu0 %v368
    %v390 = vpop.f32.mrf.mxu0
    %v391 = vadd.f32 %v359, %v390
    %392 = vmatmul.f32.gmra.mxu0 %v371
    %v393 = vpop.f32.mrf.mxu0
    %v394 = vadd.f32 %v364, %v393
    %395 = vdwg.mxu0
    %396 = vmatpush.msra.mxu0 0.0
    %397 = vmatpush.msra.mxu0 0.0
    %398 = vmatpush.msra.mxu0 0.0
    %399 = vmatpush.msra.mxu0 0.0
    %400 = vmatpush.msra.mxu0 0.0
    %401 = vmatpush.msra.mxu0 0.0
    %402 = vmatpush.msra.mxu0 0.0
    %403 = vmatpush.msra.mxu0 0.0
    %404 = vmatpush.msra.mxu0 0.0
    %405 = vmatpush.msra.mxu0 0.0
    %406 = vmatpush.msra.mxu0 0.0
    %407 = vmatpush.msra.mxu0 0.0
    %408 = vmatpush.msra.mxu0 0.0
    %409 = vmatpush.msra.mxu0 0.0
    %410 = vmatpush.msra.mxu0 %v349
    %411 = vmatpush.msra.mxu0 %v345
    %412 = vmatmul.f32.gmra.mxu0 %v368
    %v413 = vpop.f32.mrf.mxu0
    %v414 = vadd.f32 %v359, %v413
    %415 = vmatmul.f32.gmra.mxu0 %v371
    %v416 = vpop.f32.mrf.mxu0
    %v417 = vadd.f32 %v364, %v416
    %418 = vdwg.mxu0
    %419 = vmatpush.msra.mxu0 0.0
    %420 = vmatpush.msra.mxu0 0.0
    %421 = vmatpush.msra.mxu0 0.0
    %422 = vmatpush.msra.mxu0 0.0
    %423 = vmatpush.msra.mxu0 0.0
    %424 = vmatpush.msra.mxu0 0.0
    %425 = vmatpush.msra.mxu0 0.0
    %426 = vmatpush.msra.mxu0 0.0
    %427 = vmatpush.msra.mxu0 0.0
    %428 = vmatpush.msra.mxu0 0.0
    %429 = vmatpush.msra.mxu0 0.0
    %430 = vmatpush.msra.mxu0 0.0
    %431 = vmatpush.msra.mxu0 0.0
    %432 = vmatpush.msra.mxu0 0.0
    %433 = vmatpush.msra.mxu0 %v350
    %434 = vmatpush.msra.mxu0 %v346
    %435 = vmatmul.f32.gmra.mxu0 %v368
    %v436 = vpop.f32.mrf.mxu0
    %v437 = vadd.f32 %v359, %v436
    %438 = vmatmul.f32.gmra.mxu0 %v371
    %v439 = vpop.f32.mrf.mxu0
    %v440 = vadd.f32 %v364, %v439
    %441 = vdwg.mxu0
    %442 = vmatpush.msra.mxu0 0.0
    %443 = vmatpush.msra.mxu0 0.0
    %444 = vmatpush.msra.mxu0 0.0
    %445 = vmatpush.msra.mxu0 0.0
    %446 = vmatpush.msra.mxu0 0.0
    %447 = vmatpush.msra.mxu0 0.0
    %448 = vmatpush.msra.mxu0 0.0
    %449 = vmatpush.msra.mxu0 0.0
    %450 = vmatpush.msra.mxu0 0.0
    %451 = vmatpush.msra.mxu0 0.0
    %452 = vmatpush.msra.mxu0 0.0
    %453 = vmatpush.msra.mxu0 0.0
    %454 = vmatpush.msra.mxu0 0.0
    %455 = vmatpush.msra.mxu0 0.0
    %456 = vmatpush.msra.mxu0 %v351
    %457 = vmatpush.msra.mxu0 %v347
    %458 = vmatmul.f32.gmra.mxu0 %v368
    %v459 = vpop.f32.mrf.mxu0
    %v460 = vadd.f32 %v359, %v459
    %461 = vmatmul.f32.gmra.mxu0 %v371
    %v462 = vpop.f32.mrf.mxu0
    %v463 = vadd.f32 %v364, %v462
    %464 = vdwg.mxu0
    %v465 = vmax.f32 %v391, 0.0
    %v466 = vmax.f32 %v414, 0.0
    %v467 = vmax.f32 %v437, 0.0
    %v468 = vmax.f32 %v460, 0.0
    %v469 = vmax.f32 %v394, 0.0
    %v470 = vmax.f32 %v417, 0.0
    %v471 = vmax.f32 %v440, 0.0
    %v472 = vmax.f32 %v463, 0.0
    %v473 = vld [vmem:[%s7] sm:$0xff]
    %v474 = vld [vmem:[%s8] sm:$0xff]
    %476 = vset.pattern.permute.xlu0 0
    %477 = vperm.xlu0 %476, %v474
    %v478 = vpop.permute.xlu0 %477
    %v481 = vsel %vm366, %v473, 0
    %483 = vmatpush.msra.mxu0 0.0
    %484 = vmatpush.msra.mxu0 0.0
    %485 = vmatpush.msra.mxu0 0.0
    %486 = vmatpush.msra.mxu0 0.0
    %487 = vmatpush.msra.mxu0 0.0
    %488 = vmatpush.msra.mxu0 0.0
    %489 = vmatpush.msra.mxu0 0.0
    %490 = vmatpush.msra.mxu0 0.0
    %491 = vmatpush.msra.mxu0 0.0
    %492 = vmatpush.msra.mxu0 0.0
    %493 = vmatpush.msra.mxu0 0.0
    %494 = vmatpush.msra.mxu0 0.0
    %495 = vmatpush.msra.mxu0 0.0
    %496 = vmatpush.msra.mxu0 0.0
    %497 = vmatpush.msra.mxu0 %v469
    %498 = vmatpush.msra.mxu0 %v465
    %499 = vmatmul.f32.gmra.mxu0 %v481
    %v500 = vpop.f32.mrf.mxu0
    %v501 = vadd.f32 %v478, %v500
    %502 = vdwg.mxu0
    %503 = vmatpush.msra.mxu0 0.0
    %504 = vmatpush.msra.mxu0 0.0
    %505 = vmatpush.msra.mxu0 0.0
    %506 = vmatpush.msra.mxu0 0.0
    %507 = vmatpush.msra.mxu0 0.0
    %508 = vmatpush.msra.mxu0 0.0
    %509 = vmatpush.msra.mxu0 0.0
    %510 = vmatpush.msra.mxu0 0.0
    %511 = vmatpush.msra.mxu0 0.0
    %512 = vmatpush.msra.mxu0 0.0
    %513 = vmatpush.msra.mxu0 0.0
    %514 = vmatpush.msra.mxu0 0.0
    %515 = vmatpush.msra.mxu0 0.0
    %516 = vmatpush.msra.mxu0 0.0
    %517 = vmatpush.msra.mxu0 %v470
    %518 = vmatpush.msra.mxu0 %v466
    %519 = vmatmul.f32.gmra.mxu0 %v481
    %v520 = vpop.f32.mrf.mxu0
    %v521 = vadd.f32 %v478, %v520
    %522 = vdwg.mxu0
    %523 = vmatpush.msra.mxu0 0.0
    %524 = vmatpush.msra.mxu0 0.0
    %525 = vmatpush.msra.mxu0 0.0
    %526 = vmatpush.msra.mxu0 0.0
    %527 = vmatpush.msra.mxu0 0.0
    %528 = vmatpush.msra.mxu0 0.0
    %529 = vmatpush.msra.mxu0 0.0
    %530 = vmatpush.msra.mxu0 0.0
    %531 = vmatpush.msra.mxu0 0.0
    %532 = vmatpush.msra.mxu0 0.0
    %533 = vmatpush.msra.mxu0 0.0
    %534 = vmatpush.msra.mxu0 0.0
    %535 = vmatpush.msra.mxu0 0.0
    %536 = vmatpush.msra.mxu0 0.0
    %537 = vmatpush.msra.mxu0 %v471
    %538 = vmatpush.msra.mxu0 %v467
    %539 = vmatmul.f32.gmra.mxu0 %v481
    %v540 = vpop.f32.mrf.mxu0
    %v541 = vadd.f32 %v478, %v540
    %542 = vdwg.mxu0
    %543 = vmatpush.msra.mxu0 0.0
    %544 = vmatpush.msra.mxu0 0.0
    %545 = vmatpush.msra.mxu0 0.0
    %546 = vmatpush.msra.mxu0 0.0
    %547 = vmatpush.msra.mxu0 0.0
    %548 = vmatpush.msra.mxu0 0.0
    %549 = vmatpush.msra.mxu0 0.0
    %550 = vmatpush.msra.mxu0 0.0
    %551 = vmatpush.msra.mxu0 0.0
    %552 = vmatpush.msra.mxu0 0.0
    %553 = vmatpush.msra.mxu0 0.0
    %554 = vmatpush.msra.mxu0 0.0
    %555 = vmatpush.msra.mxu0 0.0
    %556 = vmatpush.msra.mxu0 0.0
    %557 = vmatpush.msra.mxu0 %v472
    %558 = vmatpush.msra.mxu0 %v468
    %559 = vmatmul.f32.gmra.mxu0 %v481
    %v560 = vpop.f32.mrf.mxu0
    %v561 = vadd.f32 %v478, %v560
    %562 = vdwg.mxu0
    %v563 = vmax.f32 %v501, 0.0
    %v564 = vmax.f32 %v521, 0.0
    %v565 = vmax.f32 %v541, 0.0
    %v566 = vmax.f32 %v561, 0.0
    %v567 = vld [vmem:[%s9] sm:$0x1]
    %v568 = vld [vmem:[#allocation2] sm:$0x1]
    %570 = vset.pattern.permute.xlu0 0
    %571 = vperm.xlu0 %570, %v568
    %v572 = vpop.permute.xlu0 %571
    %v574 = vperm.slane %v572, 0
    %vm575 = vcmask 64512
    %v577 = vsel %vm575, %v567, 0
    %579 = vmatpush.msra.mxu0 0.0
    %580 = vmatpush.msra.mxu0 0.0
    %581 = vmatpush.msra.mxu0 0.0
    %582 = vmatpush.msra.mxu0 0.0
    %583 = vmatpush.msra.mxu0 0.0
    %584 = vmatpush.msra.mxu0 0.0
    %585 = vmatpush.msra.mxu0 0.0
    %586 = vmatpush.msra.mxu0 0.0
    %587 = vmatpush.msra.mxu0 0.0
    %588 = vmatpush.msra.mxu0 0.0
    %589 = vmatpush.msra.mxu0 0.0
    %590 = vmatpush.msra.mxu0 0.0
    %591 = vmatpush.msra.mxu0 0.0
    %592 = vmatpush.msra.mxu0 0.0
    %593 = vmatpush.msra.mxu0 0.0
    %594 = vmatpush.msra.mxu0 %v563
    %595 = vmatmul.f32.gmra.mxu0 %v577
    %v596 = vpop.f32.mrf.mxu0
    %v597 = vadd.f32 %v574, %v596
    %598 = vdwg.mxu0
    %599 = vmatpush.msra.mxu0 0.0
    %600 = vmatpush.msra.mxu0 0.0
    %601 = vmatpush.msra.mxu0 0.0
    %602 = vmatpush.msra.mxu0 0.0
    %603 = vmatpush.msra.mxu0 0.0
    %604 = vmatpush.msra.mxu0 0.0
    %605 = vmatpush.msra.mxu0 0.0
    %606 = vmatpush.msra.mxu0 0.0
    %607 = vmatpush.msra.mxu0 0.0
    %608 = vmatpush.msra.mxu0 0.0
    %609 = vmatpush.msra.mxu0 0.0
    %610 = vmatpush.msra.mxu0 0.0
    %611 = vmatpush.msra.mxu0 0.0
    %612 = vmatpush.msra.mxu0 0.0
    %613 = vmatpush.msra.mxu0 0.0
    %614 = vmatpush.msra.mxu0 %v564
    %615 = vmatmul.f32.gmra.mxu0 %v577
    %v616 = vpop.f32.mrf.mxu0
    %v617 = vadd.f32 %v574, %v616
    %618 = vdwg.mxu0
    %619 = vmatpush.msra.mxu0 0.0
    %620 = vmatpush.msra.mxu0 0.0
    %621 = vmatpush.msra.mxu0 0.0
    %622 = vmatpush.msra.mxu0 0.0
    %623 = vmatpush.msra.mxu0 0.0
    %624 = vmatpush.msra.mxu0 0.0
    %625 = vmatpush.msra.mxu0 0.0
    %626 = vmatpush.msra.mxu0 0.0
    %627 = vmatpush.msra.mxu0 0.0
    %628 = vmatpush.msra.mxu0 0.0
    %629 = vmatpush.msra.mxu0 0.0
    %630 = vmatpush.msra.mxu0 0.0
    %631 = vmatpush.msra.mxu0 0.0
    %632 = vmatpush.msra.mxu0 0.0
    %633 = vmatpush.msra.mxu0 0.0
    %634 = vmatpush.msra.mxu0 %v565
    %635 = vmatmul.f32.gmra.mxu0 %v577
    %v636 = vpop.f32.mrf.mxu0
    %v637 = vadd.f32 %v574, %v636
    %638 = vdwg.mxu0
    %639 = vmatpush.msra.mxu0 0.0
    %640 = vmatpush.msra.mxu0 0.0
    %641 = vmatpush.msra.mxu0 0.0
    %642 = vmatpush.msra.mxu0 0.0
    %643 = vmatpush.msra.mxu0 0.0
    %644 = vmatpush.msra.mxu0 0.0
    %645 = vmatpush.msra.mxu0 0.0
    %646 = vmatpush.msra.mxu0 0.0
    %647 = vmatpush.msra.mxu0 0.0
    %648 = vmatpush.msra.mxu0 0.0
    %649 = vmatpush.msra.mxu0 0.0
    %650 = vmatpush.msra.mxu0 0.0
    %651 = vmatpush.msra.mxu0 0.0
    %652 = vmatpush.msra.mxu0 0.0
    %653 = vmatpush.msra.mxu0 0.0
    %654 = vmatpush.msra.mxu0 %v566
    %655 = vmatmul.f32.gmra.mxu0 %v577
    %v656 = vpop.f32.mrf.mxu0
    %v657 = vadd.f32 %v574, %v656
    %658 = vdwg.mxu0
    %v663 = vrot.slane %v617, 7
    %v664 = vrot.slane %v637, 6
    %v665 = vrot.slane %v657, 5
    %vm666 = vcmask 1040384
    %v667 = vsel %vm666, %v597, %v663
    %vm668 = vcmask 1042434
    %v669 = vsel %vm668, %v664, %v665
    %vm670 = vcmask 1041408
    %v671 = vsel %vm670, %v667, %v669
    %v673 = vlaneseq
    %vm674 = vcmp.ge.s32.totalorder %v673, 0
    %vm675 = vcmp.lt.s32.totalorder %v673, 512
    %vm676 = vmand %vm674, %vm675
    %677 = vst.msk [vmem:[#allocation3] sm:$0xf] %vm676, %v671
    // Predicated region
    $region46: #{tpu_custom_call.1} parent=1 // pred_check
      _
    $region47: #{tpu_custom_call.1} parent=1 // pred_check_branch
      %679 = sbr.rel (0) target = $region49
    $region48: #{tpu_custom_call.1} parent=1 // pred_region
      %681 = vsyncadd [#allocation4], 0
      %s683 = sshll.u32 [#allocation3], 4
      %s684 = int_to_ptr.vmem [resolvable:$true] %s683
      %s685 = sshll.u32 %s11, 4
      %s686 = int_to_ptr.hbm [resolvable:$true] %s685
      %688 = dma.vmem_to_hbm [thread:$0]  %s684, 64, %s686, [#allocation4]
    $region49: #{tpu_custom_call.1} parent=1 // pred_fallthru
      _
    // Predicated region
    $region50: #{tpu_custom_call.1} parent=1 // pred_check
      _
    $region51: #{tpu_custom_call.1} parent=1 // pred_check_branch
      %690 = sbr.rel (0) target = $region53
    $region52: #{tpu_custom_call.1} parent=1 // pred_region
      %692 = dma.done [#allocation4], 64
    $region53: #{tpu_custom_call.1} parent=1 // pred_fallthru
      _
    %693 = vsyncpa [#allocation4], 1

</llo_original>
